<compile_context>
chip_gen: v7x
topology: tpu7x:2x2x1
jax: 0.10.0
libtpu: 0.0.40
codegen_flags: <defaults>
</compile_context>

<pallas_src>
import jax
import jax.numpy as jnp
from jax.experimental import pallas as pl
from jax.experimental.pallas import tpu as pltpu


def _round_up(x, m):
    return (x + m - 1) // m * m


def _vmem_spec():
    return pl.BlockSpec(memory_space=pltpu.MemorySpace.VMEM)


# --------------------------------------------------------------------------------------
# Kernel 1: mean over the patch axis of the [B, N, K] patch tensor  ->  [B, K] (f32)
# --------------------------------------------------------------------------------------
def _make_pool_kernel(inv_n):
    def _pool_kernel(x_ref, o_ref):
        n = pl.program_id(1)

        @pl.when(n == 0)
        def _():
            o_ref[...] = jnp.zeros_like(o_ref)

        # f32 accumulation of the bf16 patch rows (sublane reduction, VPU/XLU).
        o_ref[...] += jnp.sum(x_ref[...].astype(jnp.float32), axis=1)

        @pl.when(n == pl.num_programs(1) - 1)
        def _():
            o_ref[...] *= jnp.float32(inv_n)

    return _pool_kernel


def pool_patches(x, n_real):
    """x: [B, N, K] patch tensor (bf16).  Returns [B, K] f32 mean over the patch axis.
    Padded N rows (if any) must be zero so the sum is unaffected."""
    B, N, K = x.shape

    # Leading (B) block dim is unconstrained by the (8,128) rule; it must divide Bp.
    tb = B if B < 8 else 8
    Bp = _round_up(B, tb)

    # N chunk must be a multiple of 8 OR equal to the full N extent.
    if N <= 128:
        Np, tnc = N, N                       # single full-dim chunk, no padding
    else:
        tnc = 128
        Np = _round_up(N, tnc)

    if (Bp, Np) != (B, N):
        x = jnp.pad(x, ((0, Bp - B), (0, Np - N), (0, 0)))   # zero rows: sum-safe

    grid = (Bp // tb, Np // tnc)
    out = pl.pallas_call(
        _make_pool_kernel(1.0 / n_real),
        out_shape=jax.ShapeDtypeStruct((Bp, K), jnp.float32),
        grid_spec=pltpu.PrefetchScalarGridSpec(
            num_scalar_prefetch=0,
            grid=grid,
            in_specs=[pl.BlockSpec((tb, tnc, K), lambda b, n: (b, n, 0))],
            out_specs=pl.BlockSpec((tb, K), lambda b, n: (b, 0)),
        ),
        compiler_params=pltpu.CompilerParams(
            dimension_semantics=("parallel", "arbitrary"),
        ),
        cost_estimate=pl.CostEstimate(
            flops=Bp * Np * K,
            transcendentals=0,
            bytes_accessed=Bp * Np * K * x.dtype.itemsize + Bp * K * 4,
        ),
    )(x)
    return out[:B]


# --------------------------------------------------------------------------------------
# Kernel 2: patch-embed GEMM on the pooled vector + classifier + sigmoid + BCE loss
# --------------------------------------------------------------------------------------
def _make_head_kernel(n_real_b, n_real_c):
    inv = 1.0 / (n_real_b * n_real_c)

    def _head_kernel(pooled_ref, we_ref, be_ref, wc_ref, bc_ref, y_ref,
                     logit_ref, pred_ref, loss_ref):
        # patch_embed applied to the pooled patch (exact by linearity; see wrapper).
        emb = jnp.dot(pooled_ref[...].astype(jnp.bfloat16), we_ref[...],
                      preferred_element_type=jnp.float32) + be_ref[...]        # [B, D]
        logits = jnp.dot(emb.astype(jnp.bfloat16), wc_ref[...],
                         preferred_element_type=jnp.float32) + bc_ref[...]     # [B, Cp]
        logit_ref[...] = logits
        pred_ref[...] = jax.nn.sigmoid(logits)                  # torch.sigmoid(out)

        # BCEWithLogitsLoss (mean over the real B*C entries), numerically stable form.
        y = y_ref[...]
        elt = (jnp.maximum(logits, 0.0) - logits * y
               + jnp.log1p(jnp.exp(-jnp.abs(logits))))
        col = jax.lax.broadcasted_iota(jnp.int32, elt.shape, 1)
        mask = jnp.where(col < n_real_c, jnp.float32(inv), jnp.float32(0.0))
        loss_ref[0, 0] = jnp.sum(elt * mask)

    return _head_kernel


def head(pooled, w_embed, b_embed, w_cls, b_cls, labels):
    """pooled: [B, K] f32.  Returns (logits [B, C], pred [B, C], scalar loss)."""
    B, K = pooled.shape
    D = w_embed.shape[1]
    C = w_cls.shape[1]
    Cp = _round_up(C, 128)                       # lane-dense logits / pred stores

    we = w_embed.astype(jnp.bfloat16)                                        # [K, D]
    be = b_embed.astype(jnp.float32).reshape(1, D)
    wc = jnp.zeros((D, Cp), jnp.bfloat16).at[:, :C].set(w_cls.astype(jnp.bfloat16))
    bc = jnp.zeros((1, Cp), jnp.float32).at[0, :C].set(b_cls.astype(jnp.float32))
    y = jnp.zeros((B, Cp), jnp.float32).at[:, :C].set(labels.astype(jnp.float32))

    # All operands are tiny (B x K, K x D, D x Cp) -- full-array VMEM blocks, no grid.
    logits_p, pred_p, loss = pl.pallas_call(
        _make_head_kernel(B, C),
        out_shape=(
            jax.ShapeDtypeStruct((B, Cp), jnp.float32),   # logits (padded lanes = 0)
            jax.ShapeDtypeStruct((B, Cp), jnp.float32),   # sigmoid(logits)
            jax.ShapeDtypeStruct((1, 1), jnp.float32),    # scalar loss
        ),
        in_specs=[_vmem_spec()] * 6,
        out_specs=(_vmem_spec(), _vmem_spec(), _vmem_spec()),
        cost_estimate=pl.CostEstimate(
            flops=2 * B * K * D + 2 * B * D * Cp,
            transcendentals=4 * B * Cp,
            bytes_accessed=(B * K + 3 * B * Cp + 1) * 4 + (K * D + D * Cp) * 2,
        ),
    )(pooled, we, be, wc, bc, y)
    return logits_p[:, :C], pred_p[:, :C], loss[0, 0]


# --------------------------------------------------------------------------------------
# Forward pass
# --------------------------------------------------------------------------------------
def image_classifier_forward(images, labels, params):
    B, Cin, H, W = images.shape
    P = params["patch"]
    nh, nw = H // P, W // P
    N = nh * nw
    K = P * P * Cin

    # NCHW -> [B, N, K] patch tensor (flatten order (ph, pw, c)); cast to bf16 in the
    # same XLA pass so the only full-size materialization is half-width.
    # TODO(synk): fold this rearrangement into the pooling kernel's input DMA (or keep
    # the upstream layout NHWC) instead of materializing an XLA transpose.
    x = images.reshape(B, Cin, nh, P, nw, P)
    x = jnp.transpose(x, (0, 2, 4, 3, 5, 1)).reshape(B, N, K).astype(jnp.bfloat16)

    # global_pool == 'avg' uses out[:, 1:, :].mean(dim=1).  With no transformer blocks
    # the backbone is linear per patch, so mean_n(patch_embed(x_n)) ==
    # patch_embed(mean_n(x_n)) and the CLS token never reaches the pooled slice; we pool
    # FIRST and run the (now tiny) embed GEMM on the pooled vector.  Exact for the
    # current block-free backbone.
    # TODO(synk): VisualEncoder transformer blocks (config/eval()-driven backbone) are
    # not reproduced; if they are added, restore per-patch embedding + CLS concat before
    # the blocks (params["cls_token"] is unused until then).
    pooled = pool_patches(x, N)                                            # [B, K] f32

    logits, pred, loss = head(pooled, params["w_embed"], params["b_embed"],
                              params["w_cls"], params["b_cls"],
                              labels.astype(jnp.float32))
    return {"loss": loss, "output": logits, "pred": pred}


if __name__ == "__main__":
    key = jax.random.PRNGKey(0)
    B, Cin, H, W = 2, 3, 16, 16
    P = 8                        # patch size -> N = 4 patches
    D = 32                       # hidden dim
    NUM_CLASSES = 8

    k_img, k_we, k_be, k_cls, k_wc, k_bc, k_lab = jax.random.split(key, 7)

    images = jax.random.normal(k_img, (B, Cin, H, W), dtype=jnp.float32)
    labels = (jax.random.uniform(k_lab, (B, NUM_CLASSES)) > 0.5).astype(jnp.float32)

    params = {
        "patch": P,
        "w_embed": jax.random.normal(k_we, (P * P * Cin, D), dtype=jnp.float32) * 0.02,
        "b_embed": jax.random.normal(k_be, (D,), dtype=jnp.float32) * 0.02,
        "cls_token": jax.random.normal(k_cls, (D,), dtype=jnp.float32) * 0.02,
        "w_cls": jax.random.normal(k_wc, (D, NUM_CLASSES), dtype=jnp.float32) * 0.02,
        "b_cls": jnp.zeros((NUM_CLASSES,), dtype=jnp.float32),
    }

    out = image_classifier_forward(images, labels, params)
    jax.block_until_ready(out)

    assert out["output"].shape == (B, NUM_CLASSES)
    assert out["pred"].shape == (B, NUM_CLASSES)
    assert out["loss"].shape == ()
    print("KERNEL_OK")
</pallas_src>

<mosaic_0001>
module attributes {stable_mosaic.version = 11 : i64} {
  func.func @_pool_kernel(%arg0: i32, %arg1: i32, %arg2: memref<2x4x192xbf16, #tpu.memory_space<vmem>>, %arg3: memref<2x192xf32, #tpu.memory_space<vmem>>) attributes {dimension_semantics = [#tpu.dimension_semantics<parallel>, #tpu.dimension_semantics<arbitrary>], iteration_bounds = array<i64: 1, 1>, scalar_prefetch = 0 : i64, scratch_operands = 0 : i64, tpu.core_type = #tpu.core_type<tc>, window_params = [{transform_indices = @transform_0, window_bounds = array<i64: 2, 4, 192>}, {transform_indices = @transform_1, window_bounds = array<i64: 2, 192>}]} {
    %c0_i32 = arith.constant 0 : i32
    %0 = arith.cmpi eq, %arg1, %c0_i32 : i32
    %1 = arith.extui %0 : i1 to i32
    %c0_i32_0 = arith.constant 0 : i32
    %2 = arith.cmpi ne, %1, %c0_i32_0 : i32
    scf.if %2 {
      %cst_9 = arith.constant 0.000000e+00 : f32
      %12 = vector.broadcast %cst_9 : f32 to vector<2x192xf32>
      %c0_10 = arith.constant 0 : index
      %c0_11 = arith.constant 0 : index
      %13 = vector.load %arg3[%c0_10, %c0_11] : memref<2x192xf32, #tpu.memory_space<vmem>>, vector<2x192xf32>
      tpu.vector_store %arg3[%c0_10, %c0_11], %12 {strides = array<i32>} : memref<2x192xf32, #tpu.memory_space<vmem>>, vector<2x192xf32>,
    } else {
    }
    %c0 = arith.constant 0 : index
    %c0_1 = arith.constant 0 : index
    %3 = vector.load %arg3[%c0, %c0_1] : memref<2x192xf32, #tpu.memory_space<vmem>>, vector<2x192xf32>
    %c0_2 = arith.constant 0 : index
    %c0_3 = arith.constant 0 : index
    %c0_4 = arith.constant 0 : index
    %4 = vector.load %arg2[%c0_2, %c0_3, %c0_4] : memref<2x4x192xbf16, #tpu.memory_space<vmem>>, vector<2x4x192xbf16>
    %5 = arith.extf %4 : vector<2x4x192xbf16> to vector<2x4x192xf32>
    %cst = arith.constant dense<0.000000e+00> : vector<2x192xf32>
    %6 = vector.multi_reduction <add>, %5, %cst [1] : vector<2x4x192xf32> to vector<2x192xf32>
    %7 = arith.addf %3, %6 : vector<2x192xf32>
    %c0_5 = arith.constant 0 : index
    %c0_6 = arith.constant 0 : index
    %8 = vector.load %arg3[%c0_5, %c0_6] : memref<2x192xf32, #tpu.memory_space<vmem>>, vector<2x192xf32>
    tpu.vector_store %arg3[%c0_5, %c0_6], %7 {strides = array<i32>} : memref<2x192xf32, #tpu.memory_space<vmem>>, vector<2x192xf32>,
    %c0_i32_7 = arith.constant 0 : i32
    %9 = arith.cmpi eq, %arg1, %c0_i32_7 : i32
    %10 = arith.extui %9 : i1 to i32
    %c0_i32_8 = arith.constant 0 : i32
    %11 = arith.cmpi ne, %10, %c0_i32_8 : i32
    scf.if %11 {
      %c0_9 = arith.constant 0 : index
      %c0_10 = arith.constant 0 : index
      %12 = vector.load %arg3[%c0_9, %c0_10] : memref<2x192xf32, #tpu.memory_space<vmem>>, vector<2x192xf32>
      %cst_11 = arith.constant 2.500000e-01 : f32
      %13 = vector.broadcast %cst_11 : f32 to vector<2x192xf32>
      %14 = arith.mulf %12, %13 : vector<2x192xf32>
      %c0_12 = arith.constant 0 : index
      %c0_13 = arith.constant 0 : index
      %15 = vector.load %arg3[%c0_12, %c0_13] : memref<2x192xf32, #tpu.memory_space<vmem>>, vector<2x192xf32>
      tpu.vector_store %arg3[%c0_12, %c0_13], %14 {strides = array<i32>} : memref<2x192xf32, #tpu.memory_space<vmem>>, vector<2x192xf32>,
    } else {
    }
    return
  }
  func.func @transform_0(%arg0: i32, %arg1: i32) -> (i32, i32, i32) {
    %c0_i32 = arith.constant 0 : i32
    %c0_i32_0 = arith.constant 0 : i32
    return %arg0, %arg1, %c0_i32 : i32, i32, i32
  }
  func.func @transform_1(%arg0: i32, %arg1: i32) -> (i32, i32) {
    %c0_i32 = arith.constant 0 : i32
    %c0_i32_0 = arith.constant 0 : i32
    return %arg0, %c0_i32 : i32, i32
  }
}

</mosaic_0001>

<llo_original>
// kernel: tpu_custom_call.1
$region0: #{tpu_custom_call.1}
  #allocation0 [shape = 'u32[]', space=smem, size = 0x4, offset = 0x4, fixed_abs, tag = 'smem constant byte address 0x4 - core index']
  #allocation1 [shape = 'u32[144,128]{1,0:T(1,128)}', space=vmem, size = 0x12000, scoped, tag = 'internal scratch']
  %s0 = inlined_call_operand.hbm [shape: bf16[2,4,192], index: 0, kind: input, shape index: {}]
  %s1 = inlined_call_operand.hbm [shape: f32[2,192], index: 1, kind: output, shape index: {}]
  %s2 = sld [smem:[#allocation0]]
  $region26: #{tpu_custom_call.1} parent=0
    _
  %s4 = ssub.s32 1, %s2
  %s5 = scalar_select 0, %s4, %s2
  $region1: #{tpu_custom_call.1} parent=0
    #allocation2 [shape = 'u8[4096]{0}', space=vmem, size = 0x1000, scoped, tag = 'input window, operand 0, single buffered']
    #allocation3 [shape = 's32[1]{0}', space=sflag, size = 0x4, scoped, tag = 'scoped memory for tpu_custom_call.1']
    #allocation4 [shape = 's32[1]{0}', space=sflag, size = 0x4, scoped, tag = 'scoped memory for tpu_custom_call.1']
    #allocation5 [shape = 'u8[2048]{0}', space=vmem, size = 0x800, scoped, tag = 'output window, operand 0, single buffered']
    %6 = vsyncpa [#allocation3], 0
    %7 = vsyncpa [#allocation4], 0
    // Predicated region
    $region2: #{tpu_custom_call.1} parent=1 // pred_check
      _
    $region3: #{tpu_custom_call.1} parent=1 // pred_check_branch
      %9 = sbr.rel (0) target = $region5
    $region4: #{tpu_custom_call.1} parent=1 // pred_region
      %s11 = ssub.s32 128, 128
      %12 = vsyncadd [#allocation3], %s11
      %s13 = sshll.u32 [#allocation2], 4
      %s14 = int_to_ptr.vmem [resolvable:$true] %s13
      %19 = dma.hbm_to_vmem [thread:$0]  %s0, 128, %s14, [#allocation3], 64, 64, 4
    $region5: #{tpu_custom_call.1} parent=1 // pred_fallthru
      _
    // Predicated region
    $region6: #{tpu_custom_call.1} parent=1 // pred_check
      _
    $region7: #{tpu_custom_call.1} parent=1 // pred_check_branch
      %21 = sbr.rel (0) target = $region9
    $region8: #{tpu_custom_call.1} parent=1 // pred_region
      %22 = dma.done [#allocation3], 128
    $region9: #{tpu_custom_call.1} parent=1 // pred_fallthru
      _
    %p23 = scmp.eq.s32.totalorder 0, 0
    // Predicated region
    $region10: #{tpu_custom_call.1} parent=1 // pred_check
      %p24 = pneg %p23
    $region11: #{tpu_custom_call.1} parent=1 // pred_check_branch
      %26 = sbr.rel (%p24) target = $region13
    $region12: #{tpu_custom_call.1} parent=1 // pred_region
      %vm27 = vcmask 1041408
      %vm28 = vcmask 519170
      %vm29 = vmor %vm28, %vm27
      %30 = vst.msk [vmem:[#allocation5] sm:$0xf] %vm29, 0.0
    $region13: #{tpu_custom_call.1} parent=1 // pred_fallthru
      _
    %v31 = vld [vmem:[#allocation5] sm:$0xf]
    %v32 = vld [vmem:[#allocation2] sm:$0xf]
    %v33 = vld [vmem:[#allocation2 + $0x4] sm:$0xf]
    %v34 = vunpack.c.l.bf16 %v32
    %v35 = vunpack.c.l.bf16 %v33
    %v38 = vcombine.high %v34, %v34
    %v39 = vcombine.high %v35, %v35
    %vm42 = vcmask 1043456
    %v43 = vsel %vm42, %v34, 0.0
    %v44 = vrot.slane %v43, 4
    %v45 = vadd.f32 %v43, %v44
    %v46 = vrot.slane %v45, 2
    %v47 = vadd.f32 %v45, %v46
    %v48 = vrot.slane %v47, 1
    %v49 = vadd.f32 %v47, %v48
    %vm50 = vcmask 519168
    %v51 = vsel %vm50, %v38, 0.0
    %v52 = vrot.slane %v51, 4
    %v53 = vadd.f32 %v51, %v52
    %v54 = vrot.slane %v53, 2
    %v55 = vadd.f32 %v53, %v54
    %v56 = vrot.slane %v55, 1
    %v57 = vadd.f32 %v55, %v56
    %v58 = vsel %vm42, %v35, 0.0
    %v59 = vrot.slane %v58, 4
    %v60 = vadd.f32 %v58, %v59
    %v61 = vrot.slane %v60, 2
    %v62 = vadd.f32 %v60, %v61
    %v63 = vrot.slane %v62, 1
    %v64 = vadd.f32 %v62, %v63
    %v65 = vsel %vm50, %v39, 0.0
    %v66 = vrot.slane %v65, 4
    %v67 = vadd.f32 %v65, %v66
    %v68 = vrot.slane %v67, 2
    %v69 = vadd.f32 %v67, %v68
    %v70 = vrot.slane %v69, 1
    %v71 = vadd.f32 %v69, %v70
    %v76 = vcombine.low %v49, %v57
    %v78 = vunpack.c.l.s4 1983009808
    %v79 = vunpack.c.0.s8 %v78
    %v80 = vlaneseq
    %v81 = vshrl.u32 %v80, 7
    %v82 = vsub.s32 %v79, %v81
    %v83 = vrot.slane %v76, %v82
    %v84 = vcombine.low %v64, %v71
    %v86 = vunpack.c.l.s4 1983009808
    %v87 = vunpack.c.0.s8 %v86
    %v88 = vlaneseq
    %v89 = vshrl.u32 %v88, 7
    %v90 = vsub.s32 %v87, %v89
    %v91 = vrot.slane %v84, %v90
    %vm92 = vcmask 1044484
    %v93 = vsel %vm92, %v83, %v83
    %vm94 = vcmask 1046534
    %v95 = vsel %vm94, %v83, %v93
    %v96 = vrot.slane %v91, 7
    %vm97 = vcmask 1041409
    %v98 = vsel %vm97, %v96, %v95
    %vm99 = vcmask 1043459
    %v100 = vsel %vm99, %v96, %v98
    %vm101 = vcmask 1045509
    %v102 = vsel %vm101, %v96, %v100
    %vm103 = vcmask 1047559
    %v104 = vsel %vm103, %v96, %v102
    %v106 = vadd.f32 %v31, %v104
    %vm107 = vcmask 1041408
    %vm108 = vcmask 519170
    %vm109 = vmor %vm108, %vm107
    %110 = vst.msk [vmem:[#allocation5] sm:$0xf] %vm109, %v106
    // Predicated region
    $region14: #{tpu_custom_call.1} parent=1 // pred_check
      %p111 = pneg %p23
    $region15: #{tpu_custom_call.1} parent=1 // pred_check_branch
      %113 = sbr.rel (%p111) target = $region17
    $region16: #{tpu_custom_call.1} parent=1 // pred_region
      %v114 = vld [vmem:[#allocation5] sm:$0xf]
      %v115 = vmul.f32 %v114, 0.25
      %116 = vst.msk [vmem:[#allocation5] sm:$0xf] %vm109, %v115
    $region17: #{tpu_custom_call.1} parent=1 // pred_fallthru
      _
    // Predicated region
    $region18: #{tpu_custom_call.1} parent=1 // pred_check
      _
    $region19: #{tpu_custom_call.1} parent=1 // pred_check_branch
      %118 = sbr.rel (0) target = $region21
    $region20: #{tpu_custom_call.1} parent=1 // pred_region
      %s120 = ssub.s32 64, 64
      %121 = vsyncadd [#allocation4], %s120
      %s123 = sshll.u32 [#allocation5], 4
      %s124 = int_to_ptr.vmem [resolvable:$true] %s123
      %126 = dma.vmem_to_hbm [thread:$0]  %s124, 64, %s1, [#allocation4]
    $region21: #{tpu_custom_call.1} parent=1 // pred_fallthru
      _
    // Predicated region
    $region22: #{tpu_custom_call.1} parent=1 // pred_check
      _
    $region23: #{tpu_custom_call.1} parent=1 // pred_check_branch
      %128 = sbr.rel (0) target = $region25
    $region24: #{tpu_custom_call.1} parent=1 // pred_region
      %129 = dma.done [#allocation4], 64
    $region25: #{tpu_custom_call.1} parent=1 // pred_fallthru
      _
    %130 = vsyncpa [#allocation3], 1
    %131 = vsyncpa [#allocation4], 1

</llo_original>
